<compile_context>
chip_gen: v7x
topology: tpu7x:2x2x1
jax: 0.10.0
libtpu: 0.0.40
codegen_flags: <defaults>
</compile_context>

<pallas_src>
import functools

import jax
import jax.numpy as jnp
import numpy as np
from jax.experimental import pallas as pl
from jax.experimental.pallas import tpu as pltpu

SUBLANE = 8
LANE = 128


def _round_up(n, m):
    return -(-n // m) * m


def rnn_kernel(ids_ref, slab_ref, out_ref, xih_ref, *,
               seq_len, batch, batch_pad, vocab_pad, h_pad):
    """Single-invocation kernel.

    ids_ref  : (B, T) int32 token ids in SMEM.
    slab_ref : packed f32 VMEM slab, all sections 128 lanes wide:
                 rows [0, vocab_pad)                -> proj_table = emb@W_ih^T + (b_ih+b_hh)
                 rows [vocab_pad, vocab_pad+h_pad)  -> W_hh^T (zero-padded 128x128)
                 rows [+h_pad, +2*h_pad)            -> W_fc^T (zero-padded 128x128)
                 next row                           -> b_fc   (zero-padded to 128)
    out_ref  : (batch_pad, 128) f32; real (B, O) sliced out by the wrapper.
    xih_ref  : (T*batch_pad, h_pad) f32 scratch with the gathered per-step inputs.
    """
    whh_off = vocab_pad
    wfc_off = vocab_pad + h_pad
    bfc_off = vocab_pad + 2 * h_pad

    # Hoisted input path (no dependence on h -> entirely off the serial chain).
    # Zero-init covers padded batch rows; then one lane-dense (1, 128) VMEM row
    # copy per real (t, b).  Destination offsets are static Python ints; only
    # the source row index (the token id read from SMEM) is dynamic.
    xih_ref[...] = jnp.zeros_like(xih_ref)
    for t in range(seq_len):
        for b in range(batch):
            tok = ids_ref[b, t]                                   # SMEM scalar read
            xih_ref[pl.ds(t * batch_pad + b, 1), :] = slab_ref[pl.ds(tok, 1), :]

    whh = slab_ref[pl.ds(whh_off, h_pad), :]                      # (128, 128), 16 vregs

    # Serial tanh recurrence: per step only the (8,128)x(128,128) matmul + add
    # + tanh sit on the dependence chain.  T=8 -> fully unrolled.
    def step(t, h):
        row = pl.multiple_of(t * batch_pad, batch_pad)
        x_t = xih_ref[pl.ds(row, batch_pad), :]                   # (8, 128)
        return jnp.tanh(x_t + jnp.dot(h, whh, preferred_element_type=jnp.float32))

    h_last = jax.lax.fori_loop(
        0, seq_len, step, jnp.zeros((batch_pad, h_pad), jnp.float32), unroll=True)

    # fc on the last hidden state; 128-lane padded output -> single unmasked vst.
    wfc = slab_ref[pl.ds(wfc_off, h_pad), :]                      # (128, 128)
    bfc = slab_ref[pl.ds(bfc_off, 1), :]                          # (1, 128)
    out_ref[...] = (
        jnp.dot(h_last, wfc, preferred_element_type=jnp.float32) + bfc
    ).astype(out_ref.dtype)


def prepare_params(emb_table, w_ih, w_hh, b_ih, b_hh, w_fc, b_fc):
    """One-time parameter packing (NOT per forward call).

    Folds the input projection + combined RNN bias into the embedding table
    and packs every constant into a single lane-dense (rows, 128) VMEM slab.
    """
    vocab = emb_table.shape[0]
    H = w_hh.shape[0]
    O = w_fc.shape[0]
    h_pad = _round_up(H, LANE)          # 32  -> 128
    o_pad = _round_up(O, LANE)          # 4   -> 128
    assert o_pad == h_pad, "slab packing assumes a single 128-lane width"
    vocab_pad = _round_up(vocab, SUBLANE)

    f32 = jnp.float32
    proj = emb_table.astype(f32) @ w_ih.astype(f32).T + (b_ih + b_hh).astype(f32)
    proj = jnp.pad(proj, ((0, vocab_pad - vocab), (0, h_pad - H)))          # (vocab_pad, 128)

    whh_t = jnp.pad(w_hh.astype(f32).T, ((0, h_pad - H), (0, h_pad - H)))   # (128, 128)
    wfc_t = jnp.pad(w_fc.astype(f32).T, ((0, h_pad - H), (0, o_pad - O)))   # (128, 128)
    bfc = jnp.pad(b_fc.astype(f32), (0, o_pad - O)).reshape(1, o_pad)
    bfc = jnp.pad(bfc, ((0, SUBLANE - 1), (0, 0)))                          # (8, 128)

    slab = jnp.concatenate([proj, whh_t, wfc_t, bfc], axis=0)
    meta = dict(vocab_pad=vocab_pad, h_pad=h_pad, o_pad=o_pad, hidden=H, out=O)
    return slab, meta


def rnn_forward(x, slab, meta):
    """x: (B, T) int32 token ids. Returns (B, output_size) float32 logits."""
    B, T = x.shape
    batch_pad = _round_up(max(B, 1), SUBLANE)
    out_padded = pl.pallas_call(
        functools.partial(rnn_kernel, seq_len=T, batch=B, batch_pad=batch_pad,
                          vocab_pad=meta["vocab_pad"], h_pad=meta["h_pad"]),
        out_shape=jax.ShapeDtypeStruct((batch_pad, meta["o_pad"]), jnp.float32),
        # Single invocation (no grid): two operands -> two startup DMAs.
        in_specs=[pl.BlockSpec(memory_space=pltpu.MemorySpace.SMEM),   # token ids
                  pl.BlockSpec(memory_space=pltpu.MemorySpace.VMEM)],  # packed slab
        out_specs=pl.BlockSpec(memory_space=pltpu.MemorySpace.VMEM),
        scratch_shapes=[pltpu.VMEM((T * batch_pad, meta["h_pad"]), jnp.float32)],
    )(x.astype(jnp.int32), slab)
    return out_padded[:B, :meta["out"]]


def reference_forward(x, emb_table, w_ih, w_hh, b_ih, b_hh, w_fc, b_fc):
    """Pure-JAX reference mirroring torch semantics."""
    emb = jnp.take(emb_table, x, axis=0)             # (B, T, E)
    B = x.shape[0]
    H = w_hh.shape[0]
    h0 = jnp.zeros((B, H), jnp.float32)

    def step(h, x_t):
        h = jnp.tanh(x_t @ w_ih.T + b_ih + h @ w_hh.T + b_hh)
        return h, None

    h_last, _ = jax.lax.scan(step, h0, jnp.transpose(emb, (1, 0, 2)))
    return h_last @ w_fc.T + b_fc


if __name__ == "__main__":
    vocab_size = 20
    emb_size = 16
    padding_idx = 0
    output_size = 4
    hidden_size = 32
    batch = 2
    seq = 8

    key = jax.random.PRNGKey(0)
    k_emb, k_wih, k_whh, k_bih, k_bhh, k_wfc, k_bfc, k_x = jax.random.split(key, 8)

    # Deterministic parameter init (shapes match the torch module).
    emb_table = jax.random.normal(k_emb, (vocab_size, emb_size), jnp.float32)
    emb_table = emb_table.at[padding_idx].set(0.0)   # padding_idx row is zero

    s = 1.0 / np.sqrt(hidden_size)
    w_ih = jax.random.uniform(k_wih, (hidden_size, emb_size), jnp.float32, -s, s)
    w_hh = jax.random.uniform(k_whh, (hidden_size, hidden_size), jnp.float32, -s, s)
    b_ih = jax.random.uniform(k_bih, (hidden_size,), jnp.float32, -s, s)
    b_hh = jax.random.uniform(k_bhh, (hidden_size,), jnp.float32, -s, s)
    w_fc = jax.random.uniform(k_wfc, (output_size, hidden_size), jnp.float32, -s, s)
    b_fc = jax.random.uniform(k_bfc, (output_size,), jnp.float32, -s, s)

    x = jax.random.randint(k_x, (batch, seq), 0, vocab_size, dtype=jnp.int32)

    # One-time parameter packing, then the per-call forward.
    slab, meta = prepare_params(emb_table, w_ih, w_hh, b_ih, b_hh, w_fc, b_fc)
    slab = jax.block_until_ready(slab)

    out = rnn_forward(x, slab, meta)
    out = jax.block_until_ready(out)

    ref = reference_forward(x, emb_table, w_ih, w_hh, b_ih, b_hh, w_fc, b_fc)
    np.testing.assert_allclose(np.asarray(out), np.asarray(ref), rtol=1e-5, atol=1e-5)

    print("KERNEL_OK")
</pallas_src>

<mosaic_0001>
module attributes {stable_mosaic.version = 11 : i64} {
  func.func @rnn_kernel(%arg0: memref<2x8xi32, #tpu.memory_space<smem>>, %arg1: memref<288x128xf32, #tpu.memory_space<vmem>>, %arg2: memref<8x128xf32, #tpu.memory_space<vmem>>, %arg3: memref<64x128xf32, #tpu.memory_space<vmem>>) attributes {dimension_semantics = [], scalar_prefetch = 0 : i64, scratch_operands = 1 : i64, tpu.core_type = #tpu.core_type<tc>} {
    %cst = arith.constant 0.000000e+00 : f32
    %0 = vector.broadcast %cst : f32 to vector<64x128xf32>
    %c0 = arith.constant 0 : index
    %c0_0 = arith.constant 0 : index
    %1 = vector.load %arg3[%c0, %c0_0] : memref<64x128xf32, #tpu.memory_space<vmem>>, vector<64x128xf32>
    tpu.vector_store %arg3[%c0, %c0_0], %0 {strides = array<i32>} : memref<64x128xf32, #tpu.memory_space<vmem>>, vector<64x128xf32>,
    %c0_1 = arith.constant 0 : index
    %c0_2 = arith.constant 0 : index
    %2 = memref.load %arg0[%c0_1, %c0_2] : memref<2x8xi32, #tpu.memory_space<smem>>
    %3 = arith.index_cast %2 : i32 to index
    %c0_3 = arith.constant 0 : index
    %4 = vector.load %arg1[%3, %c0_3] : memref<288x128xf32, #tpu.memory_space<vmem>>, vector<1x128xf32>
    %c0_4 = arith.constant 0 : index
    %c0_5 = arith.constant 0 : index
    %5 = vector.load %arg3[%c0_4, %c0_5] : memref<64x128xf32, #tpu.memory_space<vmem>>, vector<1x128xf32>
    tpu.vector_store %arg3[%c0_4, %c0_5], %4 {strides = array<i32>} : memref<64x128xf32, #tpu.memory_space<vmem>>, vector<1x128xf32>,
    %c1 = arith.constant 1 : index
    %c0_6 = arith.constant 0 : index
    %6 = memref.load %arg0[%c1, %c0_6] : memref<2x8xi32, #tpu.memory_space<smem>>
    %7 = arith.index_cast %6 : i32 to index
    %c0_7 = arith.constant 0 : index
    %8 = vector.load %arg1[%7, %c0_7] : memref<288x128xf32, #tpu.memory_space<vmem>>, vector<1x128xf32>
    %c1_8 = arith.constant 1 : index
    %c0_9 = arith.constant 0 : index
    %9 = vector.load %arg3[%c1_8, %c0_9] : memref<64x128xf32, #tpu.memory_space<vmem>>, vector<1x128xf32>
    tpu.vector_store %arg3[%c1_8, %c0_9], %8 {strides = array<i32>} : memref<64x128xf32, #tpu.memory_space<vmem>>, vector<1x128xf32>,
    %c0_10 = arith.constant 0 : index
    %c1_11 = arith.constant 1 : index
    %10 = memref.load %arg0[%c0_10, %c1_11] : memref<2x8xi32, #tpu.memory_space<smem>>
    %11 = arith.index_cast %10 : i32 to index
    %c0_12 = arith.constant 0 : index
    %12 = vector.load %arg1[%11, %c0_12] : memref<288x128xf32, #tpu.memory_space<vmem>>, vector<1x128xf32>
    %c8 = arith.constant 8 : index
    %c0_13 = arith.constant 0 : index
    %13 = vector.load %arg3[%c8, %c0_13] : memref<64x128xf32, #tpu.memory_space<vmem>>, vector<1x128xf32>
    tpu.vector_store %arg3[%c8, %c0_13], %12 {strides = array<i32>} : memref<64x128xf32, #tpu.memory_space<vmem>>, vector<1x128xf32>,
    %c1_14 = arith.constant 1 : index
    %c1_15 = arith.constant 1 : index
    %14 = memref.load %arg0[%c1_14, %c1_15] : memref<2x8xi32, #tpu.memory_space<smem>>
    %15 = arith.index_cast %14 : i32 to index
    %c0_16 = arith.constant 0 : index
    %16 = vector.load %arg1[%15, %c0_16] : memref<288x128xf32, #tpu.memory_space<vmem>>, vector<1x128xf32>
    %c9 = arith.constant 9 : index
    %c0_17 = arith.constant 0 : index
    %17 = vector.load %arg3[%c9, %c0_17] : memref<64x128xf32, #tpu.memory_space<vmem>>, vector<1x128xf32>
    tpu.vector_store %arg3[%c9, %c0_17], %16 {strides = array<i32>} : memref<64x128xf32, #tpu.memory_space<vmem>>, vector<1x128xf32>,
    %c0_18 = arith.constant 0 : index
    %c2 = arith.constant 2 : index
    %18 = memref.load %arg0[%c0_18, %c2] : memref<2x8xi32, #tpu.memory_space<smem>>
    %19 = arith.index_cast %18 : i32 to index
    %c0_19 = arith.constant 0 : index
    %20 = vector.load %arg1[%19, %c0_19] : memref<288x128xf32, #tpu.memory_space<vmem>>, vector<1x128xf32>
    %c16 = arith.constant 16 : index
    %c0_20 = arith.constant 0 : index
    %21 = vector.load %arg3[%c16, %c0_20] : memref<64x128xf32, #tpu.memory_space<vmem>>, vector<1x128xf32>
    tpu.vector_store %arg3[%c16, %c0_20], %20 {strides = array<i32>} : memref<64x128xf32, #tpu.memory_space<vmem>>, vector<1x128xf32>,
    %c1_21 = arith.constant 1 : index
    %c2_22 = arith.constant 2 : index
    %22 = memref.load %arg0[%c1_21, %c2_22] : memref<2x8xi32, #tpu.memory_space<smem>>
    %23 = arith.index_cast %22 : i32 to index
    %c0_23 = arith.constant 0 : index
    %24 = vector.load %arg1[%23, %c0_23] : memref<288x128xf32, #tpu.memory_space<vmem>>, vector<1x128xf32>
    %c17 = arith.constant 17 : index
    %c0_24 = arith.constant 0 : index
    %25 = vector.load %arg3[%c17, %c0_24] : memref<64x128xf32, #tpu.memory_space<vmem>>, vector<1x128xf32>
    tpu.vector_store %arg3[%c17, %c0_24], %24 {strides = array<i32>} : memref<64x128xf32, #tpu.memory_space<vmem>>, vector<1x128xf32>,
    %c0_25 = arith.constant 0 : index
    %c3 = arith.constant 3 : index
    %26 = memref.load %arg0[%c0_25, %c3] : memref<2x8xi32, #tpu.memory_space<smem>>
    %27 = arith.index_cast %26 : i32 to index
    %c0_26 = arith.constant 0 : index
    %28 = vector.load %arg1[%27, %c0_26] : memref<288x128xf32, #tpu.memory_space<vmem>>, vector<1x128xf32>
    %c24 = arith.constant 24 : index
    %c0_27 = arith.constant 0 : index
    %29 = vector.load %arg3[%c24, %c0_27] : memref<64x128xf32, #tpu.memory_space<vmem>>, vector<1x128xf32>
    tpu.vector_store %arg3[%c24, %c0_27], %28 {strides = array<i32>} : memref<64x128xf32, #tpu.memory_space<vmem>>, vector<1x128xf32>,
    %c1_28 = arith.constant 1 : index
    %c3_29 = arith.constant 3 : index
    %30 = memref.load %arg0[%c1_28, %c3_29] : memref<2x8xi32, #tpu.memory_space<smem>>
    %31 = arith.index_cast %30 : i32 to index
    %c0_30 = arith.constant 0 : index
    %32 = vector.load %arg1[%31, %c0_30] : memref<288x128xf32, #tpu.memory_space<vmem>>, vector<1x128xf32>
    %c25 = arith.constant 25 : index
    %c0_31 = arith.constant 0 : index
    %33 = vector.load %arg3[%c25, %c0_31] : memref<64x128xf32, #tpu.memory_space<vmem>>, vector<1x128xf32>
    tpu.vector_store %arg3[%c25, %c0_31], %32 {strides = array<i32>} : memref<64x128xf32, #tpu.memory_space<vmem>>, vector<1x128xf32>,
    %c0_32 = arith.constant 0 : index
    %c4 = arith.constant 4 : index
    %34 = memref.load %arg0[%c0_32, %c4] : memref<2x8xi32, #tpu.memory_space<smem>>
    %35 = arith.index_cast %34 : i32 to index
    %c0_33 = arith.constant 0 : index
    %36 = vector.load %arg1[%35, %c0_33] : memref<288x128xf32, #tpu.memory_space<vmem>>, vector<1x128xf32>
    %c32 = arith.constant 32 : index
    %c0_34 = arith.constant 0 : index
    %37 = vector.load %arg3[%c32, %c0_34] : memref<64x128xf32, #tpu.memory_space<vmem>>, vector<1x128xf32>
    tpu.vector_store %arg3[%c32, %c0_34], %36 {strides = array<i32>} : memref<64x128xf32, #tpu.memory_space<vmem>>, vector<1x128xf32>,
    %c1_35 = arith.constant 1 : index
    %c4_36 = arith.constant 4 : index
    %38 = memref.load %arg0[%c1_35, %c4_36] : memref<2x8xi32, #tpu.memory_space<smem>>
    %39 = arith.index_cast %38 : i32 to index
    %c0_37 = arith.constant 0 : index
    %40 = vector.load %arg1[%39, %c0_37] : memref<288x128xf32, #tpu.memory_space<vmem>>, vector<1x128xf32>
    %c33 = arith.constant 33 : index
    %c0_38 = arith.constant 0 : index
    %41 = vector.load %arg3[%c33, %c0_38] : memref<64x128xf32, #tpu.memory_space<vmem>>, vector<1x128xf32>
    tpu.vector_store %arg3[%c33, %c0_38], %40 {strides = array<i32>} : memref<64x128xf32, #tpu.memory_space<vmem>>, vector<1x128xf32>,
    %c0_39 = arith.constant 0 : index
    %c5 = arith.constant 5 : index
    %42 = memref.load %arg0[%c0_39, %c5] : memref<2x8xi32, #tpu.memory_space<smem>>
    %43 = arith.index_cast %42 : i32 to index
    %c0_40 = arith.constant 0 : index
    %44 = vector.load %arg1[%43, %c0_40] : memref<288x128xf32, #tpu.memory_space<vmem>>, vector<1x128xf32>
    %c40 = arith.constant 40 : index
    %c0_41 = arith.constant 0 : index
    %45 = vector.load %arg3[%c40, %c0_41] : memref<64x128xf32, #tpu.memory_space<vmem>>, vector<1x128xf32>
    tpu.vector_store %arg3[%c40, %c0_41], %44 {strides = array<i32>} : memref<64x128xf32, #tpu.memory_space<vmem>>, vector<1x128xf32>,
    %c1_42 = arith.constant 1 : index
    %c5_43 = arith.constant 5 : index
    %46 = memref.load %arg0[%c1_42, %c5_43] : memref<2x8xi32, #tpu.memory_space<smem>>
    %47 = arith.index_cast %46 : i32 to index
    %c0_44 = arith.constant 0 : index
    %48 = vector.load %arg1[%47, %c0_44] : memref<288x128xf32, #tpu.memory_space<vmem>>, vector<1x128xf32>
    %c41 = arith.constant 41 : index
    %c0_45 = arith.constant 0 : index
    %49 = vector.load %arg3[%c41, %c0_45] : memref<64x128xf32, #tpu.memory_space<vmem>>, vector<1x128xf32>
    tpu.vector_store %arg3[%c41, %c0_45], %48 {strides = array<i32>} : memref<64x128xf32, #tpu.memory_space<vmem>>, vector<1x128xf32>,
    %c0_46 = arith.constant 0 : index
    %c6 = arith.constant 6 : index
    %50 = memref.load %arg0[%c0_46, %c6] : memref<2x8xi32, #tpu.memory_space<smem>>
    %51 = arith.index_cast %50 : i32 to index
    %c0_47 = arith.constant 0 : index
    %52 = vector.load %arg1[%51, %c0_47] : memref<288x128xf32, #tpu.memory_space<vmem>>, vector<1x128xf32>
    %c48 = arith.constant 48 : index
    %c0_48 = arith.constant 0 : index
    %53 = vector.load %arg3[%c48, %c0_48] : memref<64x128xf32, #tpu.memory_space<vmem>>, vector<1x128xf32>
    tpu.vector_store %arg3[%c48, %c0_48], %52 {strides = array<i32>} : memref<64x128xf32, #tpu.memory_space<vmem>>, vector<1x128xf32>,
    %c1_49 = arith.constant 1 : index
    %c6_50 = arith.constant 6 : index
    %54 = memref.load %arg0[%c1_49, %c6_50] : memref<2x8xi32, #tpu.memory_space<smem>>
    %55 = arith.index_cast %54 : i32 to index
    %c0_51 = arith.constant 0 : index
    %56 = vector.load %arg1[%55, %c0_51] : memref<288x128xf32, #tpu.memory_space<vmem>>, vector<1x128xf32>
    %c49 = arith.constant 49 : index
    %c0_52 = arith.constant 0 : index
    %57 = vector.load %arg3[%c49, %c0_52] : memref<64x128xf32, #tpu.memory_space<vmem>>, vector<1x128xf32>
    tpu.vector_store %arg3[%c49, %c0_52], %56 {strides = array<i32>} : memref<64x128xf32, #tpu.memory_space<vmem>>, vector<1x128xf32>,
    %c0_53 = arith.constant 0 : index
    %c7 = arith.constant 7 : index
    %58 = memref.load %arg0[%c0_53, %c7] : memref<2x8xi32, #tpu.memory_space<smem>>
    %59 = arith.index_cast %58 : i32 to index
    %c0_54 = arith.constant 0 : index
    %60 = vector.load %arg1[%59, %c0_54] : memref<288x128xf32, #tpu.memory_space<vmem>>, vector<1x128xf32>
    %c56 = arith.constant 56 : index
    %c0_55 = arith.constant 0 : index
    %61 = vector.load %arg3[%c56, %c0_55] : memref<64x128xf32, #tpu.memory_space<vmem>>, vector<1x128xf32>
    tpu.vector_store %arg3[%c56, %c0_55], %60 {strides = array<i32>} : memref<64x128xf32, #tpu.memory_space<vmem>>, vector<1x128xf32>,
    %c1_56 = arith.constant 1 : index
    %c7_57 = arith.constant 7 : index
    %62 = memref.load %arg0[%c1_56, %c7_57] : memref<2x8xi32, #tpu.memory_space<smem>>
    %63 = arith.index_cast %62 : i32 to index
    %c0_58 = arith.constant 0 : index
    %64 = vector.load %arg1[%63, %c0_58] : memref<288x128xf32, #tpu.memory_space<vmem>>, vector<1x128xf32>
    %c57 = arith.constant 57 : index
    %c0_59 = arith.constant 0 : index
    %65 = vector.load %arg3[%c57, %c0_59] : memref<64x128xf32, #tpu.memory_space<vmem>>, vector<1x128xf32>
    tpu.vector_store %arg3[%c57, %c0_59], %64 {strides = array<i32>} : memref<64x128xf32, #tpu.memory_space<vmem>>, vector<1x128xf32>,
    %c24_60 = arith.constant 24 : index
    %c0_61 = arith.constant 0 : index
    %66 = vector.load %arg1[%c24_60, %c0_61] : memref<288x128xf32, #tpu.memory_space<vmem>>, vector<128x128xf32>
    %cst_62 = arith.constant 0.000000e+00 : f32
    %67 = vector.broadcast %cst_62 : f32 to vector<8x128xf32>
    %c0_i32 = arith.constant 0 : i32
    %c8_i32 = arith.constant 8 : i32
    %68 = arith.muli %c0_i32, %c8_i32 : i32
    %69 = tpu.assume_multiple %68, 8 : i32
    %70 = arith.index_cast %69 : i32 to index
    %c0_63 = arith.constant 0 : index
    %71 = vector.load %arg3[%70, %c0_63] : memref<64x128xf32, #tpu.memory_space<vmem>>, vector<8x128xf32>
    %cst_64 = arith.constant dense<0.000000e+00> : vector<8x128xf32>
    %72 = tpu.matmul %67, %66, %cst_64 {dimension_numbers = #tpu.dot_dimension_numbers<[1], [0], [0], [1], [0, 0, 1, 1], [], []>} : vector<8x128xf32>, vector<128x128xf32>, vector<8x128xf32> -> vector<8x128xf32>
    %73 = arith.addf %71, %72 : vector<8x128xf32>
    %74 = math.tanh %73 : vector<8x128xf32>
    %c1_i32 = arith.constant 1 : i32
    %c8_i32_65 = arith.constant 8 : i32
    %75 = arith.muli %c1_i32, %c8_i32_65 : i32
    %76 = tpu.assume_multiple %75, 8 : i32
    %77 = arith.index_cast %76 : i32 to index
    %c0_66 = arith.constant 0 : index
    %78 = vector.load %arg3[%77, %c0_66] : memref<64x128xf32, #tpu.memory_space<vmem>>, vector<8x128xf32>
    %cst_67 = arith.constant dense<0.000000e+00> : vector<8x128xf32>
    %79 = tpu.matmul %74, %66, %cst_67 {dimension_numbers = #tpu.dot_dimension_numbers<[1], [0], [0], [1], [0, 0, 1, 1], [], []>} : vector<8x128xf32>, vector<128x128xf32>, vector<8x128xf32> -> vector<8x128xf32>
    %80 = arith.addf %78, %79 : vector<8x128xf32>
    %81 = math.tanh %80 : vector<8x128xf32>
    %c2_i32 = arith.constant 2 : i32
    %c8_i32_68 = arith.constant 8 : i32
    %82 = arith.muli %c2_i32, %c8_i32_68 : i32
    %83 = tpu.assume_multiple %82, 8 : i32
    %84 = arith.index_cast %83 : i32 to index
    %c0_69 = arith.constant 0 : index
    %85 = vector.load %arg3[%84, %c0_69] : memref<64x128xf32, #tpu.memory_space<vmem>>, vector<8x128xf32>
    %cst_70 = arith.constant dense<0.000000e+00> : vector<8x128xf32>
    %86 = tpu.matmul %81, %66, %cst_70 {dimension_numbers = #tpu.dot_dimension_numbers<[1], [0], [0], [1], [0, 0, 1, 1], [], []>} : vector<8x128xf32>, vector<128x128xf32>, vector<8x128xf32> -> vector<8x128xf32>
    %87 = arith.addf %85, %86 : vector<8x128xf32>
    %88 = math.tanh %87 : vector<8x128xf32>
    %c3_i32 = arith.constant 3 : i32
    %c8_i32_71 = arith.constant 8 : i32
    %89 = arith.muli %c3_i32, %c8_i32_71 : i32
    %90 = tpu.assume_multiple %89, 8 : i32
    %91 = arith.index_cast %90 : i32 to index
    %c0_72 = arith.constant 0 : index
    %92 = vector.load %arg3[%91, %c0_72] : memref<64x128xf32, #tpu.memory_space<vmem>>, vector<8x128xf32>
    %cst_73 = arith.constant dense<0.000000e+00> : vector<8x128xf32>
    %93 = tpu.matmul %88, %66, %cst_73 {dimension_numbers = #tpu.dot_dimension_numbers<[1], [0], [0], [1], [0, 0, 1, 1], [], []>} : vector<8x128xf32>, vector<128x128xf32>, vector<8x128xf32> -> vector<8x128xf32>
    %94 = arith.addf %92, %93 : vector<8x128xf32>
    %95 = math.tanh %94 : vector<8x128xf32>
    %c4_i32 = arith.constant 4 : i32
    %c8_i32_74 = arith.constant 8 : i32
    %96 = arith.muli %c4_i32, %c8_i32_74 : i32
    %97 = tpu.assume_multiple %96, 8 : i32
    %98 = arith.index_cast %97 : i32 to index
    %c0_75 = arith.constant 0 : index
    %99 = vector.load %arg3[%98, %c0_75] : memref<64x128xf32, #tpu.memory_space<vmem>>, vector<8x128xf32>
    %cst_76 = arith.constant dense<0.000000e+00> : vector<8x128xf32>
    %100 = tpu.matmul %95, %66, %cst_76 {dimension_numbers = #tpu.dot_dimension_numbers<[1], [0], [0], [1], [0, 0, 1, 1], [], []>} : vector<8x128xf32>, vector<128x128xf32>, vector<8x128xf32> -> vector<8x128xf32>
    %101 = arith.addf %99, %100 : vector<8x128xf32>
    %102 = math.tanh %101 : vector<8x128xf32>
    %c5_i32 = arith.constant 5 : i32
    %c8_i32_77 = arith.constant 8 : i32
    %103 = arith.muli %c5_i32, %c8_i32_77 : i32
    %104 = tpu.assume_multiple %103, 8 : i32
    %105 = arith.index_cast %104 : i32 to index
    %c0_78 = arith.constant 0 : index
    %106 = vector.load %arg3[%105, %c0_78] : memref<64x128xf32, #tpu.memory_space<vmem>>, vector<8x128xf32>
    %cst_79 = arith.constant dense<0.000000e+00> : vector<8x128xf32>
    %107 = tpu.matmul %102, %66, %cst_79 {dimension_numbers = #tpu.dot_dimension_numbers<[1], [0], [0], [1], [0, 0, 1, 1], [], []>} : vector<8x128xf32>, vector<128x128xf32>, vector<8x128xf32> -> vector<8x128xf32>
    %108 = arith.addf %106, %107 : vector<8x128xf32>
    %109 = math.tanh %108 : vector<8x128xf32>
    %c6_i32 = arith.constant 6 : i32
    %c8_i32_80 = arith.constant 8 : i32
    %110 = arith.muli %c6_i32, %c8_i32_80 : i32
    %111 = tpu.assume_multiple %110, 8 : i32
    %112 = arith.index_cast %111 : i32 to index
    %c0_81 = arith.constant 0 : index
    %113 = vector.load %arg3[%112, %c0_81] : memref<64x128xf32, #tpu.memory_space<vmem>>, vector<8x128xf32>
    %cst_82 = arith.constant dense<0.000000e+00> : vector<8x128xf32>
    %114 = tpu.matmul %109, %66, %cst_82 {dimension_numbers = #tpu.dot_dimension_numbers<[1], [0], [0], [1], [0, 0, 1, 1], [], []>} : vector<8x128xf32>, vector<128x128xf32>, vector<8x128xf32> -> vector<8x128xf32>
    %115 = arith.addf %113, %114 : vector<8x128xf32>
    %116 = math.tanh %115 : vector<8x128xf32>
    %c7_i32 = arith.constant 7 : i32
    %c8_i32_83 = arith.constant 8 : i32
    %117 = arith.muli %c7_i32, %c8_i32_83 : i32
    %118 = tpu.assume_multiple %117, 8 : i32
    %119 = arith.index_cast %118 : i32 to index
    %c0_84 = arith.constant 0 : index
    %120 = vector.load %arg3[%119, %c0_84] : memref<64x128xf32, #tpu.memory_space<vmem>>, vector<8x128xf32>
    %cst_85 = arith.constant dense<0.000000e+00> : vector<8x128xf32>
    %121 = tpu.matmul %116, %66, %cst_85 {dimension_numbers = #tpu.dot_dimension_numbers<[1], [0], [0], [1], [0, 0, 1, 1], [], []>} : vector<8x128xf32>, vector<128x128xf32>, vector<8x128xf32> -> vector<8x128xf32>
    %122 = arith.addf %120, %121 : vector<8x128xf32>
    %123 = math.tanh %122 : vector<8x128xf32>
    %c8_i32_86 = arith.constant 8 : i32
    %c152 = arith.constant 152 : index
    %c0_87 = arith.constant 0 : index
    %124 = vector.load %arg1[%c152, %c0_87] : memref<288x128xf32, #tpu.memory_space<vmem>>, vector<128x128xf32>
    %c280 = arith.constant 280 : index
    %c0_88 = arith.constant 0 : index
    %125 = vector.load %arg1[%c280, %c0_88] : memref<288x128xf32, #tpu.memory_space<vmem>>, vector<1x128xf32>
    %cst_89 = arith.constant dense<0.000000e+00> : vector<8x128xf32>
    %126 = tpu.matmul %123, %124, %cst_89 {dimension_numbers = #tpu.dot_dimension_numbers<[1], [0], [0], [1], [0, 0, 1, 1], [], []>} : vector<8x128xf32>, vector<128x128xf32>, vector<8x128xf32> -> vector<8x128xf32>
    %127 = vector.broadcast %125 : vector<1x128xf32> to vector<8x128xf32>
    %128 = arith.addf %126, %127 : vector<8x128xf32>
    %c0_90 = arith.constant 0 : index
    %c0_91 = arith.constant 0 : index
    %129 = vector.load %arg2[%c0_90, %c0_91] : memref<8x128xf32, #tpu.memory_space<vmem>>, vector<8x128xf32>
    tpu.vector_store %arg2[%c0_90, %c0_91], %128 {strides = array<i32>} : memref<8x128xf32, #tpu.memory_space<vmem>>, vector<8x128xf32>,
    return
  }
}

</mosaic_0001>

<llo_original>
// kernel: tpu_custom_call.1
$region0: #{tpu_custom_call.1}
  #allocation0 [shape = 'u32[]', space=smem, size = 0x4, offset = 0x4, fixed_abs, tag = 'smem constant byte address 0x4 - core index']
  #allocation1 [shape = 'u32[144,128]{1,0:T(1,128)}', space=vmem, size = 0x12000, scoped, tag = 'internal scratch']
  #allocation2 [shape = 'f32[64,128]{1,0:T(8,128)}', space=vmem, size = 0x8000, scoped, tag = 'scratch operand']
  %s0 = inlined_call_operand.hbm [shape: s32[2,8], index: 0, kind: input, shape index: {}]
  %s1 = inlined_call_operand.hbm [shape: f32[288,128], index: 1, kind: input, shape index: {}]
  %s2 = inlined_call_operand.hbm [shape: f32[8,128], index: 2, kind: output, shape index: {}]
  %s3 = sld [smem:[#allocation0]]
  $region26: #{tpu_custom_call.1} parent=0
    _
  %s5 = ssub.s32 1, %s3
  %s6 = scalar_select 0, %s5, %s3
  $region1: #{tpu_custom_call.1} parent=0
    #allocation3 [shape = 'u8[1024]{0}', space=smem, size = 0x400, scoped, tag = 'input window, operand 0, single buffered']
    #allocation4 [shape = 's32[1]{0}', space=sflag, size = 0x4, scoped, tag = 'scoped memory for tpu_custom_call.1']
    #allocation5 [shape = 's32[1]{0}', space=sflag, size = 0x4, scoped, tag = 'scoped memory for tpu_custom_call.1']
    #allocation6 [shape = 's32[1]{0}', space=sflag, size = 0x4, scoped, tag = 'scoped memory for tpu_custom_call.1']
    #allocation7 [shape = 'u8[147456]{0}', space=vmem, size = 0x24000, scoped, tag = 'input window, operand 1, single buffered']
    #allocation8 [shape = 'u8[4096]{0}', space=vmem, size = 0x1000, scoped, tag = 'output window, operand 0, single buffered']
    %7 = vsyncpa [#allocation6], 0
    %8 = vsyncpa [#allocation4], 0
    %9 = vsyncpa [#allocation5], 0
    // Predicated region
    $region2: #{tpu_custom_call.1} parent=1 // pred_check
      _
    $region3: #{tpu_custom_call.1} parent=1 // pred_check_branch
      %11 = sbr.rel (0) target = $region5
    $region4: #{tpu_custom_call.1} parent=1 // pred_region
      %s13 = ssub.s32 32, 32
      %14 = vsyncadd [#allocation6], %s13
      %17 = dma.hbm_to_smem %s0, 32, [#allocation3], [#allocation6]
    $region5: #{tpu_custom_call.1} parent=1 // pred_fallthru
      _
    // Predicated region
    $region6: #{tpu_custom_call.1} parent=1 // pred_check
      _
    $region7: #{tpu_custom_call.1} parent=1 // pred_check_branch
      %19 = sbr.rel (0) target = $region9
    $region8: #{tpu_custom_call.1} parent=1 // pred_region
      %s21 = ssub.s32 4608, 4608
      %22 = vsyncadd [#allocation4], %s21
      %s23 = sshll.u32 [#allocation7], 4
      %s24 = int_to_ptr.vmem [resolvable:$true] %s23
      %29 = dma.hbm_to_vmem [thread:$0]  %s1, 4608, %s24, [#allocation4], 128, 128, 8
    $region9: #{tpu_custom_call.1} parent=1 // pred_fallthru
      _
    // Predicated region
    $region10: #{tpu_custom_call.1} parent=1 // pred_check
      _
    $region11: #{tpu_custom_call.1} parent=1 // pred_check_branch
      %31 = sbr.rel (0) target = $region13
    $region12: #{tpu_custom_call.1} parent=1 // pred_region
      %32 = dma.done [#allocation6], 32
    $region13: #{tpu_custom_call.1} parent=1 // pred_fallthru
      _
    // Predicated region
    $region14: #{tpu_custom_call.1} parent=1 // pred_check
      _
    $region15: #{tpu_custom_call.1} parent=1 // pred_check_branch
      %34 = sbr.rel (0) target = $region17
    $region16: #{tpu_custom_call.1} parent=1 // pred_region
      %35 = dma.done [#allocation4], 4608
    $region17: #{tpu_custom_call.1} parent=1 // pred_fallthru
      _
    %36 = sfence
    %37 = vst [vmem:[#allocation2] sm:$0xff] 0.0
    %38 = vst [vmem:[#allocation2 + $0x8] sm:$0xff] 0.0
    %39 = vst [vmem:[#allocation2 + $0x10] sm:$0xff] 0.0
    %40 = vst [vmem:[#allocation2 + $0x18] sm:$0xff] 0.0
    %41 = vst [vmem:[#allocation2 + $0x20] sm:$0xff] 0.0
    %42 = vst [vmem:[#allocation2 + $0x28] sm:$0xff] 0.0
    %43 = vst [vmem:[#allocation2 + $0x30] sm:$0xff] 0.0
    %44 = vst [vmem:[#allocation2 + $0x38] sm:$0xff] 0.0
    %s45 = sld [smem:[#allocation3]]
    %s46 = scalar_lea.vmem [#allocation7], %s45
    %v47 = vld [vmem:[%s46] sm:$0x1]
    %48 = vst [vmem:[#allocation2] sm:$0x1] %v47
    %s49 = sld [smem:[#allocation3 + $0x80]]
    %s50 = scalar_lea.vmem [#allocation7], %s49
    %v51 = vld [vmem:[%s50] sm:$0x1]
    %52 = vst [vmem:[#allocation2 + $0x1] sm:$0x1] %v51
    %s53 = sld [smem:[#allocation3 + $0x1]]
    %s54 = scalar_lea.vmem [#allocation7], %s53
    %v55 = vld [vmem:[%s54] sm:$0x1]
    %56 = vst [vmem:[#allocation2 + $0x8] sm:$0x1] %v55
    %s57 = sld [smem:[#allocation3 + $0x81]]
    %s58 = scalar_lea.vmem [#allocation7], %s57
    %v59 = vld [vmem:[%s58] sm:$0x1]
    %60 = vst [vmem:[#allocation2 + $0x9] sm:$0x1] %v59
    %s61 = sld [smem:[#allocation3 + $0x2]]
    %s62 = scalar_lea.vmem [#allocation7], %s61
    %v63 = vld [vmem:[%s62] sm:$0x1]
    %64 = vst [vmem:[#allocation2 + $0x10] sm:$0x1] %v63
    %s65 = sld [smem:[#allocation3 + $0x82]]
    %s66 = scalar_lea.vmem [#allocation7], %s65
    %v67 = vld [vmem:[%s66] sm:$0x1]
    %68 = vst [vmem:[#allocation2 + $0x11] sm:$0x1] %v67
    %s69 = sld [smem:[#allocation3 + $0x3]]
    %s70 = scalar_lea.vmem [#allocation7], %s69
    %v71 = vld [vmem:[%s70] sm:$0x1]
    %72 = vst [vmem:[#allocation2 + $0x18] sm:$0x1] %v71
    %s73 = sld [smem:[#allocation3 + $0x83]]
    %s74 = scalar_lea.vmem [#allocation7], %s73
    %v75 = vld [vmem:[%s74] sm:$0x1]
    %76 = vst [vmem:[#allocation2 + $0x19] sm:$0x1] %v75
    %s77 = sld [smem:[#allocation3 + $0x4]]
    %s78 = scalar_lea.vmem [#allocation7], %s77
    %v79 = vld [vmem:[%s78] sm:$0x1]
    %80 = vst [vmem:[#allocation2 + $0x20] sm:$0x1] %v79
    %s81 = sld [smem:[#allocation3 + $0x84]]
    %s82 = scalar_lea.vmem [#allocation7], %s81
    %v83 = vld [vmem:[%s82] sm:$0x1]
    %84 = vst [vmem:[#allocation2 + $0x21] sm:$0x1] %v83
    %s85 = sld [smem:[#allocation3 + $0x5]]
    %s86 = scalar_lea.vmem [#allocation7], %s85
    %v87 = vld [vmem:[%s86] sm:$0x1]
    %88 = vst [vmem:[#allocation2 + $0x28] sm:$0x1] %v87
    %s89 = sld [smem:[#allocation3 + $0x85]]
    %s90 = scalar_lea.vmem [#allocation7], %s89
    %v91 = vld [vmem:[%s90] sm:$0x1]
    %92 = vst [vmem:[#allocation2 + $0x29] sm:$0x1] %v91
    %s93 = sld [smem:[#allocation3 + $0x6]]
    %s94 = scalar_lea.vmem [#allocation7], %s93
    %v95 = vld [vmem:[%s94] sm:$0x1]
    %96 = vst [vmem:[#allocation2 + $0x30] sm:$0x1] %v95
    %s97 = sld [smem:[#allocation3 + $0x86]]
    %s98 = scalar_lea.vmem [#allocation7], %s97
    %v99 = vld [vmem:[%s98] sm:$0x1]
    %100 = vst [vmem:[#allocation2 + $0x31] sm:$0x1] %v99
    %s101 = sld [smem:[#allocation3 + $0x7]]
    %s102 = scalar_lea.vmem [#allocation7], %s101
    %v103 = vld [vmem:[%s102] sm:$0x1]
    %104 = vst [vmem:[#allocation2 + $0x38] sm:$0x1] %v103
    %s105 = sld [smem:[#allocation3 + $0x87]]
    %s106 = scalar_lea.vmem [#allocation7], %s105
    %v107 = vld [vmem:[%s106] sm:$0x1]
    %108 = vst [vmem:[#allocation2 + $0x39] sm:$0x1] %v107
    %v109 = vld [vmem:[#allocation7 + $0x18] sm:$0xff]
    %v110 = vld [vmem:[#allocation7 + $0x20] sm:$0xff]
    %v111 = vld [vmem:[#allocation7 + $0x28] sm:$0xff]
    %v112 = vld [vmem:[#allocation7 + $0x30] sm:$0xff]
    %v113 = vld [vmem:[#allocation7 + $0x38] sm:$0xff]
    %v114 = vld [vmem:[#allocation7 + $0x40] sm:$0xff]
    %v115 = vld [vmem:[#allocation7 + $0x48] sm:$0xff]
    %v116 = vld [vmem:[#allocation7 + $0x50] sm:$0xff]
    %v117 = vld [vmem:[#allocation7 + $0x58] sm:$0xff]
    %v118 = vld [vmem:[#allocation7 + $0x60] sm:$0xff]
    %v119 = vld [vmem:[#allocation7 + $0x68] sm:$0xff]
    %v120 = vld [vmem:[#allocation7 + $0x70] sm:$0xff]
    %v121 = vld [vmem:[#allocation7 + $0x78] sm:$0xff]
    %v122 = vld [vmem:[#allocation7 + $0x80] sm:$0xff]
    %v123 = vld [vmem:[#allocation7 + $0x88] sm:$0xff]
    %v124 = vld [vmem:[#allocation7 + $0x90] sm:$0xff]
    %v125 = vld [vmem:[#allocation2] sm:$0xff]
    %126 = vmatprep.subr.mxu0 0.0
    %127 = vmatpush1.msra.mxu0 %v109
    %128 = vmatprep.subr.mxu0 0.0
    %129 = vmatpush1.msra.mxu0 %v110
    %130 = vmatprep.subr.mxu0 0.0
    %131 = vmatpush1.msra.mxu0 %v111
    %132 = vmatprep.subr.mxu0 0.0
    %133 = vmatpush1.msra.mxu0 %v112
    %134 = vmatprep.subr.mxu0 0.0
    %135 = vmatpush1.msra.mxu0 %v113
    %136 = vmatprep.subr.mxu0 0.0
    %137 = vmatpush1.msra.mxu0 %v114
    %138 = vmatprep.subr.mxu0 0.0
    %139 = vmatpush1.msra.mxu0 %v115
    %140 = vmatprep.subr.mxu0 0.0
    %141 = vmatpush1.msra.mxu0 %v116
    %142 = vmatprep.subr.mxu0 0.0
    %143 = vmatpush1.msra.mxu0 %v117
    %144 = vmatprep.subr.mxu0 0.0
    %145 = vmatpush1.msra.mxu0 %v118
    %146 = vmatprep.subr.mxu0 0.0
    %147 = vmatpush1.msra.mxu0 %v119
    %148 = vmatprep.subr.mxu0 0.0
    %149 = vmatpush1.msra.mxu0 %v120
    %150 = vmatprep.subr.mxu0 0.0
    %151 = vmatpush1.msra.mxu0 %v121
    %152 = vmatprep.subr.mxu0 0.0
    %153 = vmatpush1.msra.mxu0 %v122
    %154 = vmatprep.subr.mxu0 0.0
    %155 = vmatpush1.msra.mxu0 %v123
    %156 = vmatprep.subr.mxu0 0.0
    %157 = vmatpush1.msra.mxu0 %v124
    %158 = vmatprep.subr.mxu0 0.0
    %159 = vmatpush1.msra.mxu0 0.0
    %160 = vmatprep.subr.mxu0 0.0
    %161 = vmatpush1.msra.mxu0 0.0
    %162 = vmatprep.subr.mxu0 0.0
    %163 = vmatpush1.msra.mxu0 0.0
    %164 = vmatprep.subr.mxu0 0.0
    %165 = vmatpush1.msra.mxu0 0.0
    %166 = vmatprep.subr.mxu0 0.0
    %167 = vmatpush1.msra.mxu0 0.0
    %168 = vmatprep.subr.mxu0 0.0
    %169 = vmatpush1.msra.mxu0 0.0
    %170 = vmatprep.subr.mxu0 0.0
    %171 = vmatpush1.msra.mxu0 0.0
    %172 = vmatprep.subr.mxu0 0.0
    %173 = vmatpush1.msra.mxu0 0.0
    %174 = vmatprep.subr.mxu0 0.0
    %175 = vmatpush1.msra.mxu0 0.0
    %176 = vmatprep.subr.mxu0 0.0
    %177 = vmatpush1.msra.mxu0 0.0
    %178 = vmatprep.subr.mxu0 0.0
    %179 = vmatpush1.msra.mxu0 0.0
    %180 = vmatprep.subr.mxu0 0.0
    %181 = vmatpush1.msra.mxu0 0.0
    %182 = vmatprep.subr.mxu0 0.0
    %183 = vmatpush1.msra.mxu0 0.0
    %184 = vmatprep.subr.mxu0 0.0
    %185 = vmatpush1.msra.mxu0 0.0
    %186 = vmatprep.subr.mxu0 0.0
    %187 = vmatpush1.msra.mxu0 0.0
    %188 = vmatprep.subr.mxu0 0.0
    %189 = vmatpush1.msra.mxu0 0.0
    %190 = vmatprep.mubr.f32.mxu0 0.0
    %191 = vmatmul.mubr.f32.gmra.mrb[0].mxu0 0.0
    %v192 = vpop.f32.mrb[0].mxu0
    %v193 = vadd.f32 0.0, %v192
    %v194 = vpop.f32.mrb[0].mxu0
    %195 = vdwg.mxu0
    %v196 = vadd.f32 %v125, %v193
    %v197 = vtanh.pop %v196
    %s198 = scalar_lea.vmem [#allocation2], 8
    %v199 = vld [vmem:[%s198] sm:$0xff]
    %200 = vmatprep.subr.mxu0 0.0
    %201 = vmatpush1.msra.mxu0 %v109
    %202 = vmatprep.subr.mxu0 0.0
    %203 = vmatpush1.msra.mxu0 %v110
    %204 = vmatprep.subr.mxu0 0.0
    %205 = vmatpush1.msra.mxu0 %v111
    %206 = vmatprep.subr.mxu0 0.0
    %207 = vmatpush1.msra.mxu0 %v112
    %208 = vmatprep.subr.mxu0 0.0
    %209 = vmatpush1.msra.mxu0 %v113
    %210 = vmatprep.subr.mxu0 0.0
    %211 = vmatpush1.msra.mxu0 %v114
    %212 = vmatprep.subr.mxu0 0.0
    %213 = vmatpush1.msra.mxu0 %v115
    %214 = vmatprep.subr.mxu0 0.0
    %215 = vmatpush1.msra.mxu0 %v116
    %216 = vmatprep.subr.mxu0 0.0
    %217 = vmatpush1.msra.mxu0 %v117
    %218 = vmatprep.subr.mxu0 0.0
    %219 = vmatpush1.msra.mxu0 %v118
    %220 = vmatprep.subr.mxu0 0.0
    %221 = vmatpush1.msra.mxu0 %v119
    %222 = vmatprep.subr.mxu0 0.0
    %223 = vmatpush1.msra.mxu0 %v120
    %224 = vmatprep.subr.mxu0 0.0
    %225 = vmatpush1.msra.mxu0 %v121
    %226 = vmatprep.subr.mxu0 0.0
    %227 = vmatpush1.msra.mxu0 %v122
    %228 = vmatprep.subr.mxu0 0.0
    %229 = vmatpush1.msra.mxu0 %v123
    %230 = vmatprep.subr.mxu0 0.0
    %231 = vmatpush1.msra.mxu0 %v124
    %232 = vmatprep.subr.mxu0 0.0
    %233 = vmatpush1.msra.mxu0 0.0
    %234 = vmatprep.subr.mxu0 0.0
    %235 = vmatpush1.msra.mxu0 0.0
    %236 = vmatprep.subr.mxu0 0.0
    %237 = vmatpush1.msra.mxu0 0.0
    %238 = vmatprep.subr.mxu0 0.0
    %239 = vmatpush1.msra.mxu0 0.0
    %240 = vmatprep.subr.mxu0 0.0
    %241 = vmatpush1.msra.mxu0 0.0
    %242 = vmatprep.subr.mxu0 0.0
    %243 = vmatpush1.msra.mxu0 0.0
    %244 = vmatprep.subr.mxu0 0.0
    %245 = vmatpush1.msra.mxu0 0.0
    %246 = vmatprep.subr.mxu0 0.0
    %247 = vmatpush1.msra.mxu0 0.0
    %248 = vmatprep.subr.mxu0 0.0
    %249 = vmatpush1.msra.mxu0 0.0
    %250 = vmatprep.subr.mxu0 0.0
    %251 = vmatpush1.msra.mxu0 0.0
    %252 = vmatprep.subr.mxu0 0.0
    %253 = vmatpush1.msra.mxu0 0.0
    %254 = vmatprep.subr.mxu0 0.0
    %255 = vmatpush1.msra.mxu0 0.0
    %256 = vmatprep.subr.mxu0 0.0
    %257 = vmatpush1.msra.mxu0 0.0
    %258 = vmatprep.subr.mxu0 0.0
    %259 = vmatpush1.msra.mxu0 0.0
    %260 = vmatprep.subr.mxu0 0.0
    %261 = vmatpush1.msra.mxu0 0.0
    %262 = vmatprep.subr.mxu0 0.0
    %263 = vmatpush1.msra.mxu0 0.0
    %264 = vmatprep.mubr.f32.mxu0 0.0
    %265 = vmatmul.mubr.f32.gmra.mrb[0].mxu0 %v197
    %v266 = vpop.f32.mrb[0].mxu0
    %v267 = vadd.f32 0.0, %v266
    %v268 = vpop.f32.mrb[0].mxu0
    %269 = vdwg.mxu0
    %v270 = vadd.f32 %v199, %v267
    %v271 = vtanh.pop %v270
    %s272 = scalar_lea.vmem [#allocation2], 16
    %v273 = vld [vmem:[%s272] sm:$0xff]
    %274 = vmatprep.subr.mxu0 0.0
    %275 = vmatpush1.msra.mxu0 %v109
    %276 = vmatprep.subr.mxu0 0.0
    %277 = vmatpush1.msra.mxu0 %v110
    %278 = vmatprep.subr.mxu0 0.0
    %279 = vmatpush1.msra.mxu0 %v111
    %280 = vmatprep.subr.mxu0 0.0
    %281 = vmatpush1.msra.mxu0 %v112
    %282 = vmatprep.subr.mxu0 0.0
    %283 = vmatpush1.msra.mxu0 %v113
    %284 = vmatprep.subr.mxu0 0.0
    %285 = vmatpush1.msra.mxu0 %v114
    %286 = vmatprep.subr.mxu0 0.0
    %287 = vmatpush1.msra.mxu0 %v115
    %288 = vmatprep.subr.mxu0 0.0
    %289 = vmatpush1.msra.mxu0 %v116
    %290 = vmatprep.subr.mxu0 0.0
    %291 = vmatpush1.msra.mxu0 %v117
    %292 = vmatprep.subr.mxu0 0.0
    %293 = vmatpush1.msra.mxu0 %v118
    %294 = vmatprep.subr.mxu0 0.0
    %295 = vmatpush1.msra.mxu0 %v119
    %296 = vmatprep.subr.mxu0 0.0
    %297 = vmatpush1.msra.mxu0 %v120
    %298 = vmatprep.subr.mxu0 0.0
    %299 = vmatpush1.msra.mxu0 %v121
    %300 = vmatprep.subr.mxu0 0.0
    %301 = vmatpush1.msra.mxu0 %v122
    %302 = vmatprep.subr.mxu0 0.0
    %303 = vmatpush1.msra.mxu0 %v123
    %304 = vmatprep.subr.mxu0 0.0
    %305 = vmatpush1.msra.mxu0 %v124
    %306 = vmatprep.subr.mxu0 0.0
    %307 = vmatpush1.msra.mxu0 0.0
    %308 = vmatprep.subr.mxu0 0.0
    %309 = vmatpush1.msra.mxu0 0.0
    %310 = vmatprep.subr.mxu0 0.0
    %311 = vmatpush1.msra.mxu0 0.0
    %312 = vmatprep.subr.mxu0 0.0
    %313 = vmatpush1.msra.mxu0 0.0
    %314 = vmatprep.subr.mxu0 0.0
    %315 = vmatpush1.msra.mxu0 0.0
    %316 = vmatprep.subr.mxu0 0.0
    %317 = vmatpush1.msra.mxu0 0.0
    %318 = vmatprep.subr.mxu0 0.0
    %319 = vmatpush1.msra.mxu0 0.0
    %320 = vmatprep.subr.mxu0 0.0
    %321 = vmatpush1.msra.mxu0 0.0
    %322 = vmatprep.subr.mxu0 0.0
    %323 = vmatpush1.msra.mxu0 0.0
    %324 = vmatprep.subr.mxu0 0.0
    %325 = vmatpush1.msra.mxu0 0.0
    %326 = vmatprep.subr.mxu0 0.0
    %327 = vmatpush1.msra.mxu0 0.0
    %328 = vmatprep.subr.mxu0 0.0
    %329 = vmatpush1.msra.mxu0 0.0
    %330 = vmatprep.subr.mxu0 0.0
    %331 = vmatpush1.msra.mxu0 0.0
    %332 = vmatprep.subr.mxu0 0.0
    %333 = vmatpush1.msra.mxu0 0.0
    %334 = vmatprep.subr.mxu0 0.0
    %335 = vmatpush1.msra.mxu0 0.0
    %336 = vmatprep.subr.mxu0 0.0
    %337 = vmatpush1.msra.mxu0 0.0
    %338 = vmatprep.mubr.f32.mxu0 0.0
    %339 = vmatmul.mubr.f32.gmra.mrb[0].mxu0 %v271
    %v340 = vpop.f32.mrb[0].mxu0
    %v341 = vadd.f32 0.0, %v340
    %v342 = vpop.f32.mrb[0].mxu0
    %343 = vdwg.mxu0
    %v344 = vadd.f32 %v273, %v341
    %v345 = vtanh.pop %v344
    %s346 = scalar_lea.vmem [#allocation2], 24
    %v347 = vld [vmem:[%s346] sm:$0xff]
    %348 = vmatprep.subr.mxu0 0.0
    %349 = vmatpush1.msra.mxu0 %v109
    %350 = vmatprep.subr.mxu0 0.0
    %351 = vmatpush1.msra.mxu0 %v110
    %352 = vmatprep.subr.mxu0 0.0
    %353 = vmatpush1.msra.mxu0 %v111
    %354 = vmatprep.subr.mxu0 0.0
    %355 = vmatpush1.msra.mxu0 %v112
    %356 = vmatprep.subr.mxu0 0.0
    %357 = vmatpush1.msra.mxu0 %v113
    %358 = vmatprep.subr.mxu0 0.0
    %359 = vmatpush1.msra.mxu0 %v114
    %360 = vmatprep.subr.mxu0 0.0
    %361 = vmatpush1.msra.mxu0 %v115
    %362 = vmatprep.subr.mxu0 0.0
    %363 = vmatpush1.msra.mxu0 %v116
    %364 = vmatprep.subr.mxu0 0.0
    %365 = vmatpush1.msra.mxu0 %v117
    %366 = vmatprep.subr.mxu0 0.0
    %367 = vmatpush1.msra.mxu0 %v118
    %368 = vmatprep.subr.mxu0 0.0
    %369 = vmatpush1.msra.mxu0 %v119
    %370 = vmatprep.subr.mxu0 0.0
    %371 = vmatpush1.msra.mxu0 %v120
    %372 = vmatprep.subr.mxu0 0.0
    %373 = vmatpush1.msra.mxu0 %v121
    %374 = vmatprep.subr.mxu0 0.0
    %375 = vmatpush1.msra.mxu0 %v122
    %376 = vmatprep.subr.mxu0 0.0
    %377 = vmatpush1.msra.mxu0 %v123
    %378 = vmatprep.subr.mxu0 0.0
    %379 = vmatpush1.msra.mxu0 %v124
    %380 = vmatprep.subr.mxu0 0.0
    %381 = vmatpush1.msra.mxu0 0.0
    %382 = vmatprep.subr.mxu0 0.0
    %383 = vmatpush1.msra.mxu0 0.0
    %384 = vmatprep.subr.mxu0 0.0
    %385 = vmatpush1.msra.mxu0 0.0
    %386 = vmatprep.subr.mxu0 0.0
    %387 = vmatpush1.msra.mxu0 0.0
    %388 = vmatprep.subr.mxu0 0.0
    %389 = vmatpush1.msra.mxu0 0.0
    %390 = vmatprep.subr.mxu0 0.0
    %391 = vmatpush1.msra.mxu0 0.0
    %392 = vmatprep.subr.mxu0 0.0
    %393 = vmatpush1.msra.mxu0 0.0
    %394 = vmatprep.subr.mxu0 0.0
    %395 = vmatpush1.msra.mxu0 0.0
    %396 = vmatprep.subr.mxu0 0.0
    %397 = vmatpush1.msra.mxu0 0.0
    %398 = vmatprep.subr.mxu0 0.0
    %399 = vmatpush1.msra.mxu0 0.0
    %400 = vmatprep.subr.mxu0 0.0
    %401 = vmatpush1.msra.mxu0 0.0
    %402 = vmatprep.subr.mxu0 0.0
    %403 = vmatpush1.msra.mxu0 0.0
    %404 = vmatprep.subr.mxu0 0.0
    %405 = vmatpush1.msra.mxu0 0.0
    %406 = vmatprep.subr.mxu0 0.0
    %407 = vmatpush1.msra.mxu0 0.0
    %408 = vmatprep.subr.mxu0 0.0
    %409 = vmatpush1.msra.mxu0 0.0
    %410 = vmatprep.subr.mxu0 0.0
    %411 = vmatpush1.msra.mxu0 0.0
    %412 = vmatprep.mubr.f32.mxu0 0.0
    %413 = vmatmul.mubr.f32.gmra.mrb[0].mxu0 %v345
    %v414 = vpop.f32.mrb[0].mxu0
    %v415 = vadd.f32 0.0, %v414
    %v416 = vpop.f32.mrb[0].mxu0
    %417 = vdwg.mxu0
    %v418 = vadd.f32 %v347, %v415
    %v419 = vtanh.pop %v418
    %s420 = scalar_lea.vmem [#allocation2], 32
    %v421 = vld [vmem:[%s420] sm:$0xff]
    %422 = vmatprep.subr.mxu0 0.0
    %423 = vmatpush1.msra.mxu0 %v109
    %424 = vmatprep.subr.mxu0 0.0
    %425 = vmatpush1.msra.mxu0 %v110
    %426 = vmatprep.subr.mxu0 0.0
    %427 = vmatpush1.msra.mxu0 %v111
    %428 = vmatprep.subr.mxu0 0.0
    %429 = vmatpush1.msra.mxu0 %v112
    %430 = vmatprep.subr.mxu0 0.0
    %431 = vmatpush1.msra.mxu0 %v113
    %432 = vmatprep.subr.mxu0 0.0
    %433 = vmatpush1.msra.mxu0 %v114
    %434 = vmatprep.subr.mxu0 0.0
    %435 = vmatpush1.msra.mxu0 %v115
    %436 = vmatprep.subr.mxu0 0.0
    %437 = vmatpush1.msra.mxu0 %v116
    %438 = vmatprep.subr.mxu0 0.0
    %439 = vmatpush1.msra.mxu0 %v117
    %440 = vmatprep.subr.mxu0 0.0
    %441 = vmatpush1.msra.mxu0 %v118
    %442 = vmatprep.subr.mxu0 0.0
    %443 = vmatpush1.msra.mxu0 %v119
    %444 = vmatprep.subr.mxu0 0.0
    %445 = vmatpush1.msra.mxu0 %v120
    %446 = vmatprep.subr.mxu0 0.0
    %447 = vmatpush1.msra.mxu0 %v121
    %448 = vmatprep.subr.mxu0 0.0
    %449 = vmatpush1.msra.mxu0 %v122
    %450 = vmatprep.subr.mxu0 0.0
    %451 = vmatpush1.msra.mxu0 %v123
    %452 = vmatprep.subr.mxu0 0.0
    %453 = vmatpush1.msra.mxu0 %v124
    %454 = vmatprep.subr.mxu0 0.0
    %455 = vmatpush1.msra.mxu0 0.0
    %456 = vmatprep.subr.mxu0 0.0
    %457 = vmatpush1.msra.mxu0 0.0
    %458 = vmatprep.subr.mxu0 0.0
    %459 = vmatpush1.msra.mxu0 0.0
    %460 = vmatprep.subr.mxu0 0.0
    %461 = vmatpush1.msra.mxu0 0.0
    %462 = vmatprep.subr.mxu0 0.0
    %463 = vmatpush1.msra.mxu0 0.0
    %464 = vmatprep.subr.mxu0 0.0
    %465 = vmatpush1.msra.mxu0 0.0
    %466 = vmatprep.subr.mxu0 0.0
    %467 = vmatpush1.msra.mxu0 0.0
    %468 = vmatprep.subr.mxu0 0.0
    %469 = vmatpush1.msra.mxu0 0.0
    %470 = vmatprep.subr.mxu0 0.0
    %471 = vmatpush1.msra.mxu0 0.0
    %472 = vmatprep.subr.mxu0 0.0
    %473 = vmatpush1.msra.mxu0 0.0
    %474 = vmatprep.subr.mxu0 0.0
    %475 = vmatpush1.msra.mxu0 0.0
    %476 = vmatprep.subr.mxu0 0.0
    %477 = vmatpush1.msra.mxu0 0.0
    %478 = vmatprep.subr.mxu0 0.0
    %479 = vmatpush1.msra.mxu0 0.0
    %480 = vmatprep.subr.mxu0 0.0
    %481 = vmatpush1.msra.mxu0 0.0
    %482 = vmatprep.subr.mxu0 0.0
    %483 = vmatpush1.msra.mxu0 0.0
    %484 = vmatprep.subr.mxu0 0.0
    %485 = vmatpush1.msra.mxu0 0.0
    %486 = vmatprep.mubr.f32.mxu0 0.0
    %487 = vmatmul.mubr.f32.gmra.mrb[0].mxu0 %v419
    %v488 = vpop.f32.mrb[0].mxu0
    %v489 = vadd.f32 0.0, %v488
    %v490 = vpop.f32.mrb[0].mxu0
    %491 = vdwg.mxu0
    %v492 = vadd.f32 %v421, %v489
    %v493 = vtanh.pop %v492
    %s494 = scalar_lea.vmem [#allocation2], 40
    %v495 = vld [vmem:[%s494] sm:$0xff]
    %496 = vmatprep.subr.mxu0 0.0
    %497 = vmatpush1.msra.mxu0 %v109
    %498 = vmatprep.subr.mxu0 0.0
    %499 = vmatpush1.msra.mxu0 %v110
    %500 = vmatprep.subr.mxu0 0.0
    %501 = vmatpush1.msra.mxu0 %v111
    %502 = vmatprep.subr.mxu0 0.0
    %503 = vmatpush1.msra.mxu0 %v112
    %504 = vmatprep.subr.mxu0 0.0
    %505 = vmatpush1.msra.mxu0 %v113
    %506 = vmatprep.subr.mxu0 0.0
    %507 = vmatpush1.msra.mxu0 %v114
    %508 = vmatprep.subr.mxu0 0.0
    %509 = vmatpush1.msra.mxu0 %v115
    %510 = vmatprep.subr.mxu0 0.0
    %511 = vmatpush1.msra.mxu0 %v116
    %512 = vmatprep.subr.mxu0 0.0
    %513 = vmatpush1.msra.mxu0 %v117
    %514 = vmatprep.subr.mxu0 0.0
    %515 = vmatpush1.msra.mxu0 %v118
    %516 = vmatprep.subr.mxu0 0.0
    %517 = vmatpush1.msra.mxu0 %v119
    %518 = vmatprep.subr.mxu0 0.0
    %519 = vmatpush1.msra.mxu0 %v120
    %520 = vmatprep.subr.mxu0 0.0
    %521 = vmatpush1.msra.mxu0 %v121
    %522 = vmatprep.subr.mxu0 0.0
    %523 = vmatpush1.msra.mxu0 %v122
    %524 = vmatprep.subr.mxu0 0.0
    %525 = vmatpush1.msra.mxu0 %v123
    %526 = vmatprep.subr.mxu0 0.0
    %527 = vmatpush1.msra.mxu0 %v124
    %528 = vmatprep.subr.mxu0 0.0
    %529 = vmatpush1.msra.mxu0 0.0
    %530 = vmatprep.subr.mxu0 0.0
    %531 = vmatpush1.msra.mxu0 0.0
    %532 = vmatprep.subr.mxu0 0.0
    %533 = vmatpush1.msra.mxu0 0.0
    %534 = vmatprep.subr.mxu0 0.0
    %535 = vmatpush1.msra.mxu0 0.0
    %536 = vmatprep.subr.mxu0 0.0
    %537 = vmatpush1.msra.mxu0 0.0
    %538 = vmatprep.subr.mxu0 0.0
    %539 = vmatpush1.msra.mxu0 0.0
    %540 = vmatprep.subr.mxu0 0.0
    %541 = vmatpush1.msra.mxu0 0.0
    %542 = vmatprep.subr.mxu0 0.0
    %543 = vmatpush1.msra.mxu0 0.0
    %544 = vmatprep.subr.mxu0 0.0
    %545 = vmatpush1.msra.mxu0 0.0
    %546 = vmatprep.subr.mxu0 0.0
    %547 = vmatpush1.msra.mxu0 0.0
    %548 = vmatprep.subr.mxu0 0.0
    %549 = vmatpush1.msra.mxu0 0.0
    %550 = vmatprep.subr.mxu0 0.0
    %551 = vmatpush1.msra.mxu0 0.0
    %552 = vmatprep.subr.mxu0 0.0
    %553 = vmatpush1.msra.mxu0 0.0
    %554 = vmatprep.subr.mxu0 0.0
    %555 = vmatpush1.msra.mxu0 0.0
    %556 = vmatprep.subr.mxu0 0.0
    %557 = vmatpush1.msra.mxu0 0.0
    %558 = vmatprep.subr.mxu0 0.0
    %559 = vmatpush1.msra.mxu0 0.0
    %560 = vmatprep.mubr.f32.mxu0 0.0
    %561 = vmatmul.mubr.f32.gmra.mrb[0].mxu0 %v493
    %v562 = vpop.f32.mrb[0].mxu0
    %v563 = vadd.f32 0.0, %v562
    %v564 = vpop.f32.mrb[0].mxu0
    %565 = vdwg.mxu0
    %v566 = vadd.f32 %v495, %v563
    %v567 = vtanh.pop %v566
    %s568 = scalar_lea.vmem [#allocation2], 48
    %v569 = vld [vmem:[%s568] sm:$0xff]
    %570 = vmatprep.subr.mxu0 0.0
    %571 = vmatpush1.msra.mxu0 %v109
    %572 = vmatprep.subr.mxu0 0.0
    %573 = vmatpush1.msra.mxu0 %v110
    %574 = vmatprep.subr.mxu0 0.0
    %575 = vmatpush1.msra.mxu0 %v111
    %576 = vmatprep.subr.mxu0 0.0
    %577 = vmatpush1.msra.mxu0 %v112
    %578 = vmatprep.subr.mxu0 0.0
    %579 = vmatpush1.msra.mxu0 %v113
    %580 = vmatprep.subr.mxu0 0.0
    %581 = vmatpush1.msra.mxu0 %v114
    %582 = vmatprep.subr.mxu0 0.0
    %583 = vmatpush1.msra.mxu0 %v115
    %584 = vmatprep.subr.mxu0 0.0
    %585 = vmatpush1.msra.mxu0 %v116
    %586 = vmatprep.subr.mxu0 0.0
    %587 = vmatpush1.msra.mxu0 %v117
    %588 = vmatprep.subr.mxu0 0.0
    %589 = vmatpush1.msra.mxu0 %v118
    %590 = vmatprep.subr.mxu0 0.0
    %591 = vmatpush1.msra.mxu0 %v119
    %592 = vmatprep.subr.mxu0 0.0
    %593 = vmatpush1.msra.mxu0 %v120
    %594 = vmatprep.subr.mxu0 0.0
    %595 = vmatpush1.msra.mxu0 %v121
    %596 = vmatprep.subr.mxu0 0.0
    %597 = vmatpush1.msra.mxu0 %v122
    %598 = vmatprep.subr.mxu0 0.0
    %599 = vmatpush1.msra.mxu0 %v123
    %600 = vmatprep.subr.mxu0 0.0
    %601 = vmatpush1.msra.mxu0 %v124
    %602 = vmatprep.subr.mxu0 0.0
    %603 = vmatpush1.msra.mxu0 0.0
    %604 = vmatprep.subr.mxu0 0.0
    %605 = vmatpush1.msra.mxu0 0.0
    %606 = vmatprep.subr.mxu0 0.0
    %607 = vmatpush1.msra.mxu0 0.0
    %608 = vmatprep.subr.mxu0 0.0
    %609 = vmatpush1.msra.mxu0 0.0
    %610 = vmatprep.subr.mxu0 0.0
    %611 = vmatpush1.msra.mxu0 0.0
    %612 = vmatprep.subr.mxu0 0.0
    %613 = vmatpush1.msra.mxu0 0.0
    %614 = vmatprep.subr.mxu0 0.0
    %615 = vmatpush1.msra.mxu0 0.0
    %616 = vmatprep.subr.mxu0 0.0
    %617 = vmatpush1.msra.mxu0 0.0
    %618 = vmatprep.subr.mxu0 0.0
    %619 = vmatpush1.msra.mxu0 0.0
    %620 = vmatprep.subr.mxu0 0.0
    %621 = vmatpush1.msra.mxu0 0.0
    %622 = vmatprep.subr.mxu0 0.0
    %623 = vmatpush1.msra.mxu0 0.0
    %624 = vmatprep.subr.mxu0 0.0
    %625 = vmatpush1.msra.mxu0 0.0
    %626 = vmatprep.subr.mxu0 0.0
    %627 = vmatpush1.msra.mxu0 0.0
    %628 = vmatprep.subr.mxu0 0.0
    %629 = vmatpush1.msra.mxu0 0.0
    %630 = vmatprep.subr.mxu0 0.0
    %631 = vmatpush1.msra.mxu0 0.0
    %632 = vmatprep.subr.mxu0 0.0
    %633 = vmatpush1.msra.mxu0 0.0
    %634 = vmatprep.mubr.f32.mxu0 0.0
    %635 = vmatmul.mubr.f32.gmra.mrb[0].mxu0 %v567
    %v636 = vpop.f32.mrb[0].mxu0
    %v637 = vadd.f32 0.0, %v636
    %v638 = vpop.f32.mrb[0].mxu0
    %639 = vdwg.mxu0
    %v640 = vadd.f32 %v569, %v637
    %v641 = vtanh.pop %v640
    %s642 = scalar_lea.vmem [#allocation2], 56
    %v643 = vld [vmem:[%s642] sm:$0xff]
    %644 = vmatprep.subr.mxu0 0.0
    %645 = vmatpush1.msra.mxu0 %v109
    %646 = vmatprep.subr.mxu0 0.0
    %647 = vmatpush1.msra.mxu0 %v110
    %648 = vmatprep.subr.mxu0 0.0
    %649 = vmatpush1.msra.mxu0 %v111
    %650 = vmatprep.subr.mxu0 0.0
    %651 = vmatpush1.msra.mxu0 %v112
    %652 = vmatprep.subr.mxu0 0.0
    %653 = vmatpush1.msra.mxu0 %v113
    %654 = vmatprep.subr.mxu0 0.0
    %655 = vmatpush1.msra.mxu0 %v114
    %656 = vmatprep.subr.mxu0 0.0
    %657 = vmatpush1.msra.mxu0 %v115
    %658 = vmatprep.subr.mxu0 0.0
    %659 = vmatpush1.msra.mxu0 %v116
    %660 = vmatprep.subr.mxu0 0.0
    %661 = vmatpush1.msra.mxu0 %v117
    %662 = vmatprep.subr.mxu0 0.0
    %663 = vmatpush1.msra.mxu0 %v118
    %664 = vmatprep.subr.mxu0 0.0
    %665 = vmatpush1.msra.mxu0 %v119
    %666 = vmatprep.subr.mxu0 0.0
    %667 = vmatpush1.msra.mxu0 %v120
    %668 = vmatprep.subr.mxu0 0.0
    %669 = vmatpush1.msra.mxu0 %v121
    %670 = vmatprep.subr.mxu0 0.0
    %671 = vmatpush1.msra.mxu0 %v122
    %672 = vmatprep.subr.mxu0 0.0
    %673 = vmatpush1.msra.mxu0 %v123
    %674 = vmatprep.subr.mxu0 0.0
    %675 = vmatpush1.msra.mxu0 %v124
    %676 = vmatprep.subr.mxu0 0.0
    %677 = vmatpush1.msra.mxu0 0.0
    %678 = vmatprep.subr.mxu0 0.0
    %679 = vmatpush1.msra.mxu0 0.0
    %680 = vmatprep.subr.mxu0 0.0
    %681 = vmatpush1.msra.mxu0 0.0
    %682 = vmatprep.subr.mxu0 0.0
    %683 = vmatpush1.msra.mxu0 0.0
    %684 = vmatprep.subr.mxu0 0.0
    %685 = vmatpush1.msra.mxu0 0.0
    %686 = vmatprep.subr.mxu0 0.0
    %687 = vmatpush1.msra.mxu0 0.0
    %688 = vmatprep.subr.mxu0 0.0
    %689 = vmatpush1.msra.mxu0 0.0
    %690 = vmatprep.subr.mxu0 0.0
    %691 = vmatpush1.msra.mxu0 0.0
    %692 = vmatprep.subr.mxu0 0.0
    %693 = vmatpush1.msra.mxu0 0.0
    %694 = vmatprep.subr.mxu0 0.0
    %695 = vmatpush1.msra.mxu0 0.0
    %696 = vmatprep.subr.mxu0 0.0
    %697 = vmatpush1.msra.mxu0 0.0
    %698 = vmatprep.subr.mxu0 0.0
    %699 = vmatpush1.msra.mxu0 0.0
    %700 = vmatprep.subr.mxu0 0.0
    %701 = vmatpush1.msra.mxu0 0.0
    %702 = vmatprep.subr.mxu0 0.0
    %703 = vmatpush1.msra.mxu0 0.0
    %704 = vmatprep.subr.mxu0 0.0
    %705 = vmatpush1.msra.mxu0 0.0
    %706 = vmatprep.subr.mxu0 0.0
    %707 = vmatpush1.msra.mxu0 0.0
    %708 = vmatprep.mubr.f32.mxu0 0.0
    %709 = vmatmul.mubr.f32.gmra.mrb[0].mxu0 %v641
    %v710 = vpop.f32.mrb[0].mxu0
    %v711 = vadd.f32 0.0, %v710
    %v712 = vpop.f32.mrb[0].mxu0
    %713 = vdwg.mxu0
    %v714 = vadd.f32 %v643, %v711
    %v715 = vtanh.pop %v714
    %v716 = vld [vmem:[#allocation7 + $0x98] sm:$0xff]
    %v717 = vld [vmem:[#allocation7 + $0xa0] sm:$0xff]
    %v718 = vld [vmem:[#allocation7 + $0xa8] sm:$0xff]
    %v719 = vld [vmem:[#allocation7 + $0xb0] sm:$0xff]
    %v720 = vld [vmem:[#allocation7 + $0xb8] sm:$0xff]
    %v721 = vld [vmem:[#allocation7 + $0xc0] sm:$0xff]
    %v722 = vld [vmem:[#allocation7 + $0xc8] sm:$0xff]
    %v723 = vld [vmem:[#allocation7 + $0xd0] sm:$0xff]
    %v724 = vld [vmem:[#allocation7 + $0xd8] sm:$0xff]
    %v725 = vld [vmem:[#allocation7 + $0xe0] sm:$0xff]
    %v726 = vld [vmem:[#allocation7 + $0xe8] sm:$0xff]
    %v727 = vld [vmem:[#allocation7 + $0xf0] sm:$0xff]
    %v728 = vld [vmem:[#allocation7 + $0xf8] sm:$0xff]
    %v729 = vld [vmem:[#allocation7 + $0x100] sm:$0xff]
    %v730 = vld [vmem:[#allocation7 + $0x108] sm:$0xff]
    %v731 = vld [vmem:[#allocation7 + $0x110] sm:$0xff]
    %v732 = vld [vmem:[#allocation7 + $0x118] sm:$0x1]
    %v733 = vlaneseq
    %v734 = vshrl.u32 %v733, 7
    %v735 = vsub.s32 0, %v734
    %v736 = vrot.slane %v732, %v735
    %737 = vmatprep.subr.mxu0 0.0
    %738 = vmatpush1.msra.mxu0 %v716
    %739 = vmatprep.subr.mxu0 0.0
    %740 = vmatpush1.msra.mxu0 %v717
    %741 = vmatprep.subr.mxu0 0.0
    %742 = vmatpush1.msra.mxu0 %v718
    %743 = vmatprep.subr.mxu0 0.0
    %744 = vmatpush1.msra.mxu0 %v719
    %745 = vmatprep.subr.mxu0 0.0
    %746 = vmatpush1.msra.mxu0 %v720
    %747 = vmatprep.subr.mxu0 0.0
    %748 = vmatpush1.msra.mxu0 %v721
    %749 = vmatprep.subr.mxu0 0.0
    %750 = vmatpush1.msra.mxu0 %v722
    %751 = vmatprep.subr.mxu0 0.0
    %752 = vmatpush1.msra.mxu0 %v723
    %753 = vmatprep.subr.mxu0 0.0
    %754 = vmatpush1.msra.mxu0 %v724
    %755 = vmatprep.subr.mxu0 0.0
    %756 = vmatpush1.msra.mxu0 %v725
    %757 = vmatprep.subr.mxu0 0.0
    %758 = vmatpush1.msra.mxu0 %v726
    %759 = vmatprep.subr.mxu0 0.0
    %760 = vmatpush1.msra.mxu0 %v727
    %761 = vmatprep.subr.mxu0 0.0
    %762 = vmatpush1.msra.mxu0 %v728
    %763 = vmatprep.subr.mxu0 0.0
    %764 = vmatpush1.msra.mxu0 %v729
    %765 = vmatprep.subr.mxu0 0.0
    %766 = vmatpush1.msra.mxu0 %v730
    %767 = vmatprep.subr.mxu0 0.0
    %768 = vmatpush1.msra.mxu0 %v731
    %769 = vmatprep.subr.mxu0 0.0
    %770 = vmatpush1.msra.mxu0 0.0
    %771 = vmatprep.subr.mxu0 0.0
    %772 = vmatpush1.msra.mxu0 0.0
    %773 = vmatprep.subr.mxu0 0.0
    %774 = vmatpush1.msra.mxu0 0.0
    %775 = vmatprep.subr.mxu0 0.0
    %776 = vmatpush1.msra.mxu0 0.0
    %777 = vmatprep.subr.mxu0 0.0
    %778 = vmatpush1.msra.mxu0 0.0
    %779 = vmatprep.subr.mxu0 0.0
    %780 = vmatpush1.msra.mxu0 0.0
    %781 = vmatprep.subr.mxu0 0.0
    %782 = vmatpush1.msra.mxu0 0.0
    %783 = vmatprep.subr.mxu0 0.0
    %784 = vmatpush1.msra.mxu0 0.0
    %785 = vmatprep.subr.mxu0 0.0
    %786 = vmatpush1.msra.mxu0 0.0
    %787 = vmatprep.subr.mxu0 0.0
    %788 = vmatpush1.msra.mxu0 0.0
    %789 = vmatprep.subr.mxu0 0.0
    %790 = vmatpush1.msra.mxu0 0.0
    %791 = vmatprep.subr.mxu0 0.0
    %792 = vmatpush1.msra.mxu0 0.0
    %793 = vmatprep.subr.mxu0 0.0
    %794 = vmatpush1.msra.mxu0 0.0
    %795 = vmatprep.subr.mxu0 0.0
    %796 = vmatpush1.msra.mxu0 0.0
    %797 = vmatprep.subr.mxu0 0.0
    %798 = vmatpush1.msra.mxu0 0.0
    %799 = vmatprep.subr.mxu0 0.0
    %800 = vmatpush1.msra.mxu0 0.0
    %801 = vmatprep.mubr.f32.mxu0 0.0
    %802 = vmatmul.mubr.f32.gmra.mrb[0].mxu0 %v715
    %v803 = vpop.f32.mrb[0].mxu0
    %v804 = vadd.f32 %v736, %v803
    %v805 = vpop.f32.mrb[0].mxu0
    %806 = vdwg.mxu0
    %807 = vst [vmem:[#allocation8] sm:$0xff] %v804
    // Predicated region
    $region18: #{tpu_custom_call.1} parent=1 // pred_check
      _
    $region19: #{tpu_custom_call.1} parent=1 // pred_check_branch
      %809 = sbr.rel (0) target = $region21
    $region20: #{tpu_custom_call.1} parent=1 // pred_region
      %s811 = ssub.s32 128, 128
      %812 = vsyncadd [#allocation5], %s811
      %s814 = sshll.u32 [#allocation8], 4
      %s815 = int_to_ptr.vmem [resolvable:$true] %s814
      %817 = dma.vmem_to_hbm [thread:$0]  %s815, 128, %s2, [#allocation5]
    $region21: #{tpu_custom_call.1} parent=1 // pred_fallthru
      _
    // Predicated region
    $region22: #{tpu_custom_call.1} parent=1 // pred_check
      _
    $region23: #{tpu_custom_call.1} parent=1 // pred_check_branch
      %819 = sbr.rel (0) target = $region25
    $region24: #{tpu_custom_call.1} parent=1 // pred_region
      %820 = dma.done [#allocation5], 128
    $region25: #{tpu_custom_call.1} parent=1 // pred_fallthru
      _
    %821 = vsyncpa [#allocation4], 1
    %822 = vsyncpa [#allocation5], 1
    %823 = vsyncpa [#allocation6], 1

</llo_original>
